<compile_context>
chip_gen: v7x
topology: tpu7x:2x2x1
jax: 0.10.0
libtpu: 0.0.40
codegen_flags: <defaults>
</compile_context>

<pallas_src>
import functools

import jax
import jax.numpy as jnp
from jax.experimental import pallas as pl
from jax.experimental.pallas import tpu as pltpu


# ---------------------------------------------------------------------------
# Pallas kernel: one batch element per grid step.
# ---------------------------------------------------------------------------
def resnet1d_kernel(x1_ref, wc_ref, bc_ref, g1_ref, be1_ref,
                    w2_ref, b2_ref, g2_ref, be2_ref, avg_ref,
                    out_ref, *, T, K, Cout, eps):
    f32 = jnp.float32
    pad = K // 2
    Tdense = out_ref.shape[-1]

    # Lane-validity mask: only the first T lanes hold real data.
    mask = (jax.lax.broadcasted_iota(jnp.int32, (1, Tdense), 1) < T).astype(f32)

    def gn_mish(h, gamma, beta):
        # GroupNorm: single masked lane reduction per moment, then a (C,C)
        # group-averaging matmul (avg[i,j] = 1/(cg*T) iff i,j share a group) that
        # both combines the cg channels of a group and broadcasts the stat back.
        hm = h * mask
        s1 = jnp.sum(hm, axis=-1, keepdims=True)           # (C, 1)  sum x
        s2 = jnp.sum(hm * hm, axis=-1, keepdims=True)       # (C, 1)  sum x^2
        mean = jnp.dot(avg_ref[...], s1, preferred_element_type=f32)
        ex2 = jnp.dot(avg_ref[...], s2, preferred_element_type=f32)
        var = ex2 - mean * mean
        hn = (h - mean) * jax.lax.rsqrt(var + eps) * gamma + beta
        # Mish with one EUP op: x*tanh(softplus(x)); tanh(log t) = (t^2-1)/(t^2+1).
        t = 1.0 + jnp.exp(jnp.minimum(hn, 20.0))
        t2 = t * t
        return jnp.where(hn > 20.0, hn, hn * (t2 - 1.0) / (t2 + 1.0))

    # ---- conv1 + residual 1x1 conv: single fused MXU matmul ----
    # wc: (2*Cout, K*Cin).  Rows [0,Cout) = conv1 taps, rows [Cout,2*Cout) read only
    # the centre tap (residual 1x1 conv).  x1: wrapper-built im2col (K*Cin, Tdense).
    y = jnp.dot(wc_ref[...], x1_ref[...], preferred_element_type=f32) + bc_ref[...]
    h = gn_mish(y[:Cout], g1_ref[...], be1_ref[...])
    res = y[Cout:]

    # ---- conv2: in-kernel im2col (K tap-shifted copies on sublanes), one matmul ----
    hm = h * mask                                    # zero padding / junk lanes
    zpad = jnp.zeros((Cout, pad), f32)
    hp = jnp.concatenate([zpad, hm, zpad], axis=1)   # (Cout, Tdense + 2*pad)
    x2 = jnp.concatenate([hp[:, j:j + Tdense] for j in range(K)], axis=0)
    h2 = jnp.dot(w2_ref[...], x2.astype(w2_ref.dtype),
                 preferred_element_type=f32) + b2_ref[...]
    h2 = gn_mish(h2, g2_ref[...], be2_ref[...])

    out_ref[...] = (h2 + res).astype(out_ref.dtype)


# ---------------------------------------------------------------------------
# Wrapper: layout plumbing (im2col, weight flattening, lane padding) + pallas_call.
# ---------------------------------------------------------------------------
def resnet1d_block(x, p, *, kernel_size=5, n_groups=4, eps=1e-5,
                   mxu_dtype=jnp.float32):
    """x: (B, Cin, T); p: ResNet1DBlock params in PyTorch layout.
    Set mxu_dtype=jnp.bfloat16 on v6e/v7x for ~2x MXU throughput (elementwise math
    stays f32); keep f32 on v5e / for tight reference checks."""
    B, Cin, T = x.shape
    K = kernel_size
    pad = K // 2
    Cout = p["w1"].shape[0]
    assert Cout % n_groups == 0
    Tdense = pl.cdiv(T, 128) * 128           # lane-dense time axis (unmasked vst)

    x32 = x.astype(jnp.float32)
    # Zero-padded input, wide enough for all K taps over Tdense output columns.
    xp = jnp.pad(x32, ((0, 0), (0, 0), (pad, Tdense + pad - T)))
    # Wrapper-side im2col: K tap-shifted slices stacked along the channel axis.
    x1cat = jnp.concatenate([xp[:, :, j:j + Tdense] for j in range(K)], axis=1)

    # conv1 weight flattened tap-major -> (Cout, K*Cin); residual 1x1 conv appended
    # as Cout extra output rows reading only the centre tap -> one fused matmul.
    w1f = jnp.transpose(p["w1"].astype(jnp.float32), (0, 2, 1)).reshape(Cout, K * Cin)
    wrf = jnp.zeros((Cout, K * Cin), jnp.float32)
    wrf = wrf.at[:, pad * Cin:(pad + 1) * Cin].set(p["wr"].astype(jnp.float32))
    wc = jnp.concatenate([w1f, wrf], axis=0)                        # (2*Cout, K*Cin)
    bc = jnp.concatenate([p["b1"], p["br"]]).reshape(2 * Cout, 1).astype(jnp.float32)

    w2f = jnp.transpose(p["w2"].astype(jnp.float32), (0, 2, 1)).reshape(Cout, K * Cout)

    # Group-averaging matrix: avg[i,j] = 1/(cg*T) iff channels i,j share a group.
    cg = Cout // n_groups
    gid = jnp.arange(Cout) // cg
    avg = (gid[:, None] == gid[None, :]).astype(jnp.float32) / float(cg * T)

    col = lambda v: v.reshape(Cout, 1).astype(jnp.float32)
    args = (x1cat.astype(mxu_dtype), wc.astype(mxu_dtype), bc,
            col(p["g1"]), col(p["be1"]),
            w2f.astype(mxu_dtype), col(p["b2"]), col(p["g2"]), col(p["be2"]),
            avg)

    rep = lambda shape: pl.BlockSpec(shape, lambda b: (0, 0))
    out = pl.pallas_call(
        functools.partial(resnet1d_kernel, T=T, K=K, Cout=Cout, eps=eps),
        out_shape=jax.ShapeDtypeStruct((B, Cout, Tdense), jnp.float32),
        grid=(B,),
        in_specs=[
            pl.BlockSpec((None, K * Cin, Tdense), lambda b: (b, 0, 0)),
            rep((2 * Cout, K * Cin)), rep((2 * Cout, 1)),
            rep((Cout, 1)), rep((Cout, 1)),
            rep((Cout, K * Cout)), rep((Cout, 1)), rep((Cout, 1)), rep((Cout, 1)),
            rep((Cout, Cout)),
        ],
        out_specs=pl.BlockSpec((None, Cout, Tdense), lambda b: (b, 0, 0)),
        compiler_params=pltpu.CompilerParams(
            dimension_semantics=("parallel",)),
        # At real VAE sizes (C ~ O(100), T >= 512, large B) add a T-tiling grid axis
        # and set vmem_limit_bytes (v7x has only 64 MiB physical VMEM).
    )(*args)
    return out[:, :, :T]


# ---------------------------------------------------------------------------
# Pure-JAX reference (mirrors the PyTorch forward) for correctness checking.
# ---------------------------------------------------------------------------
def ref_forward(x, p, *, kernel_size=5, n_groups=4, eps=1e-5):
    pad = kernel_size // 2

    def conv1d(h, w, b):
        y = jax.lax.conv_general_dilated(h, w, (1,), [(pad, pad)],
                                         dimension_numbers=("NCH", "OIH", "NCH"))
        return y + b[None, :, None]

    def gn(h, gamma, beta):
        B, C, T = h.shape
        cg = C // n_groups
        hr = h.reshape(B, n_groups, cg, T)
        mu = hr.mean(axis=(2, 3), keepdims=True)
        var = ((hr - mu) ** 2).mean(axis=(2, 3), keepdims=True)
        hn = ((hr - mu) / jnp.sqrt(var + eps)).reshape(B, C, T)
        return hn * gamma[None, :, None] + beta[None, :, None]

    def mish(v):
        sp = jnp.where(v > 20.0, v, jnp.log1p(jnp.exp(jnp.minimum(v, 20.0))))
        return v * jnp.tanh(sp)

    h = mish(gn(conv1d(x, p["w1"], p["b1"]), p["g1"], p["be1"]))
    h = mish(gn(conv1d(h, p["w2"], p["b2"]), p["g2"], p["be2"]))
    res = jnp.einsum("oc,bct->bot", p["wr"], x) + p["br"][None, :, None]
    return h + res


if __name__ == "__main__":
    B, Cin, Cout, T, K, G = 2, 4, 8, 16, 5, 4

    key = jax.random.PRNGKey(0)
    ks = jax.random.split(key, 12)
    p = {
        "w1": 0.3 * jax.random.normal(ks[0], (Cout, Cin, K), jnp.float32),
        "b1": 0.1 * jax.random.normal(ks[1], (Cout,), jnp.float32),
        "g1": 1.0 + 0.1 * jax.random.normal(ks[2], (Cout,), jnp.float32),
        "be1": 0.1 * jax.random.normal(ks[3], (Cout,), jnp.float32),
        "w2": 0.3 * jax.random.normal(ks[4], (Cout, Cout, K), jnp.float32),
        "b2": 0.1 * jax.random.normal(ks[5], (Cout,), jnp.float32),
        "g2": 1.0 + 0.1 * jax.random.normal(ks[6], (Cout,), jnp.float32),
        "be2": 0.1 * jax.random.normal(ks[7], (Cout,), jnp.float32),
        "wr": 0.3 * jax.random.normal(ks[8], (Cout, Cin), jnp.float32),
        "br": 0.1 * jax.random.normal(ks[9], (Cout,), jnp.float32),
    }
    x = jax.random.normal(ks[11], (B, Cin, T), jnp.float32)

    out = resnet1d_block(x, p, kernel_size=K, n_groups=G)
    out = jax.block_until_ready(out)

    ref = ref_forward(x, p, kernel_size=K, n_groups=G)
    assert out.shape == (B, Cout, T)
    assert jnp.allclose(out, ref, atol=2e-4, rtol=2e-4), (
        f"max abs err = {jnp.max(jnp.abs(out - ref))}")
    print("KERNEL_OK")
</pallas_src>

<mosaic_0001>
module attributes {stable_mosaic.version = 11 : i64} {
  func.func @resnet1d_kernel(%arg0: i32, %arg1: memref<1x20x128xf32, #tpu.memory_space<vmem>>, %arg2: memref<16x20xf32, #tpu.memory_space<vmem>>, %arg3: memref<16x1xf32, #tpu.memory_space<vmem>>, %arg4: memref<8x1xf32, #tpu.memory_space<vmem>>, %arg5: memref<8x1xf32, #tpu.memory_space<vmem>>, %arg6: memref<8x40xf32, #tpu.memory_space<vmem>>, %arg7: memref<8x1xf32, #tpu.memory_space<vmem>>, %arg8: memref<8x1xf32, #tpu.memory_space<vmem>>, %arg9: memref<8x1xf32, #tpu.memory_space<vmem>>, %arg10: memref<8x8xf32, #tpu.memory_space<vmem>>, %arg11: memref<1x8x128xf32, #tpu.memory_space<vmem>>) attributes {dimension_semantics = [#tpu.dimension_semantics<parallel>], iteration_bounds = array<i64: 2>, scalar_prefetch = 0 : i64, scratch_operands = 0 : i64, tpu.core_type = #tpu.core_type<tc>, window_params = [{transform_indices = @transform_0, window_bounds = array<i64: 1, 20, 128>}, {pipeline_mode = #tpu.pipeline_mode<synchronous>, transform_indices = @transform_1, window_bounds = array<i64: 16, 20>}, {pipeline_mode = #tpu.pipeline_mode<synchronous>, transform_indices = @transform_2, window_bounds = array<i64: 16, 1>}, {pipeline_mode = #tpu.pipeline_mode<synchronous>, transform_indices = @transform_3, window_bounds = array<i64: 8, 1>}, {pipeline_mode = #tpu.pipeline_mode<synchronous>, transform_indices = @transform_4, window_bounds = array<i64: 8, 1>}, {pipeline_mode = #tpu.pipeline_mode<synchronous>, transform_indices = @transform_5, window_bounds = array<i64: 8, 40>}, {pipeline_mode = #tpu.pipeline_mode<synchronous>, transform_indices = @transform_6, window_bounds = array<i64: 8, 1>}, {pipeline_mode = #tpu.pipeline_mode<synchronous>, transform_indices = @transform_7, window_bounds = array<i64: 8, 1>}, {pipeline_mode = #tpu.pipeline_mode<synchronous>, transform_indices = @transform_8, window_bounds = array<i64: 8, 1>}, {pipeline_mode = #tpu.pipeline_mode<synchronous>, transform_indices = @transform_9, window_bounds = array<i64: 8, 8>}, {transform_indices = @transform_10, window_bounds = array<i64: 1, 8, 128>}]} {
    %0 = tpu.iota {dimensions = array<i32: 1>} : vector<1x128xi32>
    %c16_i32 = arith.constant 16 : i32
    %1 = vector.broadcast %c16_i32 : i32 to vector<1x128xi32>
    %2 = arith.cmpi slt, %0, %1 : vector<1x128xi32>
    %3 = arith.extui %2 : vector<1x128xi1> to vector<1x128xi32>
    %4 = arith.sitofp %3 : vector<1x128xi32> to vector<1x128xf32>
    %c0 = arith.constant 0 : index
    %c0_0 = arith.constant 0 : index
    %5 = vector.load %arg2[%c0, %c0_0] : memref<16x20xf32, #tpu.memory_space<vmem>>, vector<16x20xf32>
    %c0_1 = arith.constant 0 : index
    %c0_2 = arith.constant 0 : index
    %c0_3 = arith.constant 0 : index
    %6 = vector.load %arg1[%c0_1, %c0_2, %c0_3] : memref<1x20x128xf32, #tpu.memory_space<vmem>>, vector<1x20x128xf32>
    %7 = vector.shape_cast %6 : vector<1x20x128xf32> to vector<20x128xf32>
    %cst = arith.constant dense<0.000000e+00> : vector<16x128xf32>
    %8 = tpu.matmul %5, %7, %cst {dimension_numbers = #tpu.dot_dimension_numbers<[1], [0], [0], [1], [0, 0, 1, 1], [], []>} : vector<16x20xf32>, vector<20x128xf32>, vector<16x128xf32> -> vector<16x128xf32>
    %c0_4 = arith.constant 0 : index
    %c0_5 = arith.constant 0 : index
    %9 = vector.load %arg3[%c0_4, %c0_5] : memref<16x1xf32, #tpu.memory_space<vmem>>, vector<16x1xf32>
    %10 = vector.broadcast %9 : vector<16x1xf32> to vector<16x128xf32>
    %11 = arith.addf %8, %10 : vector<16x128xf32>
    %12 = vector.extract_strided_slice %11 {offsets = [0, 0], sizes = [8, 128], strides = [1, 1]} : vector<16x128xf32> to vector<8x128xf32>
    %c0_6 = arith.constant 0 : index
    %c0_7 = arith.constant 0 : index
    %13 = vector.load %arg4[%c0_6, %c0_7] : memref<8x1xf32, #tpu.memory_space<vmem>>, vector<8x1xf32>
    %c0_8 = arith.constant 0 : index
    %c0_9 = arith.constant 0 : index
    %14 = vector.load %arg5[%c0_8, %c0_9] : memref<8x1xf32, #tpu.memory_space<vmem>>, vector<8x1xf32>
    %15 = vector.broadcast %4 : vector<1x128xf32> to vector<8x128xf32>
    %16 = arith.mulf %12, %15 : vector<8x128xf32>
    %cst_10 = arith.constant dense<0.000000e+00> : vector<8xf32>
    %17 = vector.multi_reduction <add>, %16, %cst_10 [1] : vector<8x128xf32> to vector<8xf32>
    %18 = vector.shape_cast %17 : vector<8xf32> to vector<8x1xf32>
    %19 = arith.mulf %16, %16 : vector<8x128xf32>
    %cst_11 = arith.constant dense<0.000000e+00> : vector<8xf32>
    %20 = vector.multi_reduction <add>, %19, %cst_11 [1] : vector<8x128xf32> to vector<8xf32>
    %21 = vector.shape_cast %20 : vector<8xf32> to vector<8x1xf32>
    %c0_12 = arith.constant 0 : index
    %c0_13 = arith.constant 0 : index
    %22 = vector.load %arg10[%c0_12, %c0_13] : memref<8x8xf32, #tpu.memory_space<vmem>>, vector<8x8xf32>
    %cst_14 = arith.constant dense<0.000000e+00> : vector<8x1xf32>
    %23 = tpu.matmul %22, %18, %cst_14 {dimension_numbers = #tpu.dot_dimension_numbers<[1], [0], [0], [1], [0, 0, 1, 1], [], []>} : vector<8x8xf32>, vector<8x1xf32>, vector<8x1xf32> -> vector<8x1xf32>
    %c0_15 = arith.constant 0 : index
    %c0_16 = arith.constant 0 : index
    %24 = vector.load %arg10[%c0_15, %c0_16] : memref<8x8xf32, #tpu.memory_space<vmem>>, vector<8x8xf32>
    %cst_17 = arith.constant dense<0.000000e+00> : vector<8x1xf32>
    %25 = tpu.matmul %24, %21, %cst_17 {dimension_numbers = #tpu.dot_dimension_numbers<[1], [0], [0], [1], [0, 0, 1, 1], [], []>} : vector<8x8xf32>, vector<8x1xf32>, vector<8x1xf32> -> vector<8x1xf32>
    %26 = arith.mulf %23, %23 : vector<8x1xf32>
    %27 = arith.subf %25, %26 : vector<8x1xf32>
    %28 = vector.broadcast %23 : vector<8x1xf32> to vector<8x128xf32>
    %29 = arith.subf %12, %28 : vector<8x128xf32>
    %cst_18 = arith.constant 9.99999974E-6 : f32
    %30 = vector.broadcast %cst_18 : f32 to vector<8x1xf32>
    %31 = arith.addf %27, %30 : vector<8x1xf32>
    %32 = math.rsqrt %31 : vector<8x1xf32>
    %33 = vector.broadcast %32 : vector<8x1xf32> to vector<8x128xf32>
    %34 = arith.mulf %29, %33 : vector<8x128xf32>
    %35 = vector.broadcast %13 : vector<8x1xf32> to vector<8x128xf32>
    %36 = arith.mulf %34, %35 : vector<8x128xf32>
    %37 = vector.broadcast %14 : vector<8x1xf32> to vector<8x128xf32>
    %38 = arith.addf %36, %37 : vector<8x128xf32>
    %cst_19 = arith.constant 2.000000e+01 : f32
    %39 = vector.broadcast %cst_19 : f32 to vector<8x128xf32>
    %40 = arith.minimumf %38, %39 : vector<8x128xf32>
    %41 = math.exp %40 : vector<8x128xf32>
    %cst_20 = arith.constant 1.000000e+00 : f32
    %42 = vector.broadcast %cst_20 : f32 to vector<8x128xf32>
    %43 = arith.addf %42, %41 : vector<8x128xf32>
    %44 = arith.mulf %43, %43 : vector<8x128xf32>
    %cst_21 = arith.constant 2.000000e+01 : f32
    %45 = vector.broadcast %cst_21 : f32 to vector<8x128xf32>
    %46 = arith.cmpf ogt, %38, %45 : vector<8x128xf32>
    %cst_22 = arith.constant 1.000000e+00 : f32
    %47 = vector.broadcast %cst_22 : f32 to vector<8x128xf32>
    %48 = arith.subf %44, %47 : vector<8x128xf32>
    %49 = arith.mulf %38, %48 : vector<8x128xf32>
    %cst_23 = arith.constant 1.000000e+00 : f32
    %50 = vector.broadcast %cst_23 : f32 to vector<8x128xf32>
    %51 = arith.addf %44, %50 : vector<8x128xf32>
    %52 = arith.divf %49, %51 : vector<8x128xf32>
    %53 = arith.select %46, %38, %52 : vector<8x128xi1>, vector<8x128xf32>
    %54 = vector.extract_strided_slice %11 {offsets = [8, 0], sizes = [8, 128], strides = [1, 1]} : vector<16x128xf32> to vector<8x128xf32>
    %55 = vector.broadcast %4 : vector<1x128xf32> to vector<8x128xf32>
    %56 = arith.mulf %53, %55 : vector<8x128xf32>
    %cst_24 = arith.constant 0.000000e+00 : f32
    %57 = vector.broadcast %cst_24 : f32 to vector<8x2xf32>
    %58 = tpu.concatenate %57, %56, %57 in 1 : vector<8x2xf32>, vector<8x128xf32>, vector<8x2xf32> -> vector<8x132xf32>
    %59 = vector.extract_strided_slice %58 {offsets = [0, 0], sizes = [8, 128], strides = [1, 1]} : vector<8x132xf32> to vector<8x128xf32>
    %60 = vector.extract_strided_slice %58 {offsets = [0, 1], sizes = [8, 128], strides = [1, 1]} : vector<8x132xf32> to vector<8x128xf32>
    %61 = vector.extract_strided_slice %58 {offsets = [0, 2], sizes = [8, 128], strides = [1, 1]} : vector<8x132xf32> to vector<8x128xf32>
    %62 = vector.extract_strided_slice %58 {offsets = [0, 3], sizes = [8, 128], strides = [1, 1]} : vector<8x132xf32> to vector<8x128xf32>
    %63 = vector.extract_strided_slice %58 {offsets = [0, 4], sizes = [8, 128], strides = [1, 1]} : vector<8x132xf32> to vector<8x128xf32>
    %64 = tpu.concatenate %59, %60, %61, %62, %63 in 0 : vector<8x128xf32>, vector<8x128xf32>, vector<8x128xf32>, vector<8x128xf32>, vector<8x128xf32> -> vector<40x128xf32>
    %c0_25 = arith.constant 0 : index
    %c0_26 = arith.constant 0 : index
    %65 = vector.load %arg6[%c0_25, %c0_26] : memref<8x40xf32, #tpu.memory_space<vmem>>, vector<8x40xf32>
    %cst_27 = arith.constant dense<0.000000e+00> : vector<8x128xf32>
    %66 = tpu.matmul %65, %64, %cst_27 {dimension_numbers = #tpu.dot_dimension_numbers<[1], [0], [0], [1], [0, 0, 1, 1], [], []>} : vector<8x40xf32>, vector<40x128xf32>, vector<8x128xf32> -> vector<8x128xf32>
    %c0_28 = arith.constant 0 : index
    %c0_29 = arith.constant 0 : index
    %67 = vector.load %arg7[%c0_28, %c0_29] : memref<8x1xf32, #tpu.memory_space<vmem>>, vector<8x1xf32>
    %68 = vector.broadcast %67 : vector<8x1xf32> to vector<8x128xf32>
    %69 = arith.addf %66, %68 : vector<8x128xf32>
    %c0_30 = arith.constant 0 : index
    %c0_31 = arith.constant 0 : index
    %70 = vector.load %arg8[%c0_30, %c0_31] : memref<8x1xf32, #tpu.memory_space<vmem>>, vector<8x1xf32>
    %c0_32 = arith.constant 0 : index
    %c0_33 = arith.constant 0 : index
    %71 = vector.load %arg9[%c0_32, %c0_33] : memref<8x1xf32, #tpu.memory_space<vmem>>, vector<8x1xf32>
    %72 = vector.broadcast %4 : vector<1x128xf32> to vector<8x128xf32>
    %73 = arith.mulf %69, %72 : vector<8x128xf32>
    %cst_34 = arith.constant dense<0.000000e+00> : vector<8xf32>
    %74 = vector.multi_reduction <add>, %73, %cst_34 [1] : vector<8x128xf32> to vector<8xf32>
    %75 = vector.shape_cast %74 : vector<8xf32> to vector<8x1xf32>
    %76 = arith.mulf %73, %73 : vector<8x128xf32>
    %cst_35 = arith.constant dense<0.000000e+00> : vector<8xf32>
    %77 = vector.multi_reduction <add>, %76, %cst_35 [1] : vector<8x128xf32> to vector<8xf32>
    %78 = vector.shape_cast %77 : vector<8xf32> to vector<8x1xf32>
    %c0_36 = arith.constant 0 : index
    %c0_37 = arith.constant 0 : index
    %79 = vector.load %arg10[%c0_36, %c0_37] : memref<8x8xf32, #tpu.memory_space<vmem>>, vector<8x8xf32>
    %cst_38 = arith.constant dense<0.000000e+00> : vector<8x1xf32>
    %80 = tpu.matmul %79, %75, %cst_38 {dimension_numbers = #tpu.dot_dimension_numbers<[1], [0], [0], [1], [0, 0, 1, 1], [], []>} : vector<8x8xf32>, vector<8x1xf32>, vector<8x1xf32> -> vector<8x1xf32>
    %c0_39 = arith.constant 0 : index
    %c0_40 = arith.constant 0 : index
    %81 = vector.load %arg10[%c0_39, %c0_40] : memref<8x8xf32, #tpu.memory_space<vmem>>, vector<8x8xf32>
    %cst_41 = arith.constant dense<0.000000e+00> : vector<8x1xf32>
    %82 = tpu.matmul %81, %78, %cst_41 {dimension_numbers = #tpu.dot_dimension_numbers<[1], [0], [0], [1], [0, 0, 1, 1], [], []>} : vector<8x8xf32>, vector<8x1xf32>, vector<8x1xf32> -> vector<8x1xf32>
    %83 = arith.mulf %80, %80 : vector<8x1xf32>
    %84 = arith.subf %82, %83 : vector<8x1xf32>
    %85 = vector.broadcast %80 : vector<8x1xf32> to vector<8x128xf32>
    %86 = arith.subf %69, %85 : vector<8x128xf32>
    %cst_42 = arith.constant 9.99999974E-6 : f32
    %87 = vector.broadcast %cst_42 : f32 to vector<8x1xf32>
    %88 = arith.addf %84, %87 : vector<8x1xf32>
    %89 = math.rsqrt %88 : vector<8x1xf32>
    %90 = vector.broadcast %89 : vector<8x1xf32> to vector<8x128xf32>
    %91 = arith.mulf %86, %90 : vector<8x128xf32>
    %92 = vector.broadcast %70 : vector<8x1xf32> to vector<8x128xf32>
    %93 = arith.mulf %91, %92 : vector<8x128xf32>
    %94 = vector.broadcast %71 : vector<8x1xf32> to vector<8x128xf32>
    %95 = arith.addf %93, %94 : vector<8x128xf32>
    %cst_43 = arith.constant 2.000000e+01 : f32
    %96 = vector.broadcast %cst_43 : f32 to vector<8x128xf32>
    %97 = arith.minimumf %95, %96 : vector<8x128xf32>
    %98 = math.exp %97 : vector<8x128xf32>
    %cst_44 = arith.constant 1.000000e+00 : f32
    %99 = vector.broadcast %cst_44 : f32 to vector<8x128xf32>
    %100 = arith.addf %99, %98 : vector<8x128xf32>
    %101 = arith.mulf %100, %100 : vector<8x128xf32>
    %cst_45 = arith.constant 2.000000e+01 : f32
    %102 = vector.broadcast %cst_45 : f32 to vector<8x128xf32>
    %103 = arith.cmpf ogt, %95, %102 : vector<8x128xf32>
    %cst_46 = arith.constant 1.000000e+00 : f32
    %104 = vector.broadcast %cst_46 : f32 to vector<8x128xf32>
    %105 = arith.subf %101, %104 : vector<8x128xf32>
    %106 = arith.mulf %95, %105 : vector<8x128xf32>
    %cst_47 = arith.constant 1.000000e+00 : f32
    %107 = vector.broadcast %cst_47 : f32 to vector<8x128xf32>
    %108 = arith.addf %101, %107 : vector<8x128xf32>
    %109 = arith.divf %106, %108 : vector<8x128xf32>
    %110 = arith.select %103, %95, %109 : vector<8x128xi1>, vector<8x128xf32>
    %111 = arith.addf %110, %54 : vector<8x128xf32>
    %c0_48 = arith.constant 0 : index
    %c0_49 = arith.constant 0 : index
    %c0_50 = arith.constant 0 : index
    %112 = vector.load %arg11[%c0_48, %c0_49, %c0_50] : memref<1x8x128xf32, #tpu.memory_space<vmem>>, vector<1x8x128xf32>
    %113 = vector.shape_cast %112 : vector<1x8x128xf32> to vector<8x128xf32>
    %114 = vector.shape_cast %111 : vector<8x128xf32> to vector<1x8x128xf32>
    tpu.vector_store %arg11[%c0_48, %c0_49, %c0_50], %114 {strides = array<i32>} : memref<1x8x128xf32, #tpu.memory_space<vmem>>, vector<1x8x128xf32>,
    return
  }
  func.func @transform_0(%arg0: i32) -> (i32, i32, i32) {
    %c0_i32 = arith.constant 0 : i32
    %c0_i32_0 = arith.constant 0 : i32
    %c0_i32_1 = arith.constant 0 : i32
    return %arg0, %c0_i32, %c0_i32_0 : i32, i32, i32
  }
  func.func @transform_1(%arg0: i32) -> (i32, i32) {
    %c0_i32 = arith.constant 0 : i32
    %c0_i32_0 = arith.constant 0 : i32
    %c0_i32_1 = arith.constant 0 : i32
    return %c0_i32, %c0_i32_0 : i32, i32
  }
  func.func @transform_2(%arg0: i32) -> (i32, i32) {
    %c0_i32 = arith.constant 0 : i32
    %c0_i32_0 = arith.constant 0 : i32
    %c0_i32_1 = arith.constant 0 : i32
    return %c0_i32, %c0_i32_0 : i32, i32
  }
  func.func @transform_3(%arg0: i32) -> (i32, i32) {
    %c0_i32 = arith.constant 0 : i32
    %c0_i32_0 = arith.constant 0 : i32
    %c0_i32_1 = arith.constant 0 : i32
    return %c0_i32, %c0_i32_0 : i32, i32
  }
  func.func @transform_4(%arg0: i32) -> (i32, i32) {
    %c0_i32 = arith.constant 0 : i32
    %c0_i32_0 = arith.constant 0 : i32
    %c0_i32_1 = arith.constant 0 : i32
    return %c0_i32, %c0_i32_0 : i32, i32
  }
  func.func @transform_5(%arg0: i32) -> (i32, i32) {
    %c0_i32 = arith.constant 0 : i32
    %c0_i32_0 = arith.constant 0 : i32
    %c0_i32_1 = arith.constant 0 : i32
    return %c0_i32, %c0_i32_0 : i32, i32
  }
  func.func @transform_6(%arg0: i32) -> (i32, i32) {
    %c0_i32 = arith.constant 0 : i32
    %c0_i32_0 = arith.constant 0 : i32
    %c0_i32_1 = arith.constant 0 : i32
    return %c0_i32, %c0_i32_0 : i32, i32
  }
  func.func @transform_7(%arg0: i32) -> (i32, i32) {
    %c0_i32 = arith.constant 0 : i32
    %c0_i32_0 = arith.constant 0 : i32
    %c0_i32_1 = arith.constant 0 : i32
    return %c0_i32, %c0_i32_0 : i32, i32
  }
  func.func @transform_8(%arg0: i32) -> (i32, i32) {
    %c0_i32 = arith.constant 0 : i32
    %c0_i32_0 = arith.constant 0 : i32
    %c0_i32_1 = arith.constant 0 : i32
    return %c0_i32, %c0_i32_0 : i32, i32
  }
  func.func @transform_9(%arg0: i32) -> (i32, i32) {
    %c0_i32 = arith.constant 0 : i32
    %c0_i32_0 = arith.constant 0 : i32
    %c0_i32_1 = arith.constant 0 : i32
    return %c0_i32, %c0_i32_0 : i32, i32
  }
  func.func @transform_10(%arg0: i32) -> (i32, i32, i32) {
    %c0_i32 = arith.constant 0 : i32
    %c0_i32_0 = arith.constant 0 : i32
    %c0_i32_1 = arith.constant 0 : i32
    return %arg0, %c0_i32, %c0_i32_0 : i32, i32, i32
  }
}

</mosaic_0001>

<llo_original>
// kernel: tpu_custom_call.1
$region0: #{tpu_custom_call.1}
  #allocation0 [shape = 'u32[]', space=smem, size = 0x4, offset = 0x4, fixed_abs, tag = 'smem constant byte address 0x4 - core index']
  #allocation1 [shape = 'u32[144,128]{1,0:T(1,128)}', space=vmem, size = 0x12000, scoped, tag = 'internal scratch']
  %s0 = inlined_call_operand.vmem [shape: f32[2,20,128], index: 0, kind: input, shape index: {}]
  %s1 = inlined_call_operand.vmem [shape: f32[16,20], index: 1, kind: input, shape index: {}]
  %s2 = inlined_call_operand.vmem [shape: f32[16,1], index: 2, kind: input, shape index: {}]
  %s3 = inlined_call_operand.vmem [shape: f32[8,1], index: 3, kind: input, shape index: {}]
  %s4 = inlined_call_operand.vmem [shape: f32[8,1], index: 4, kind: input, shape index: {}]
  %s5 = inlined_call_operand.vmem [shape: f32[8,40], index: 5, kind: input, shape index: {}]
  %s6 = inlined_call_operand.vmem [shape: f32[8,1], index: 6, kind: input, shape index: {}]
  %s7 = inlined_call_operand.vmem [shape: f32[8,1], index: 7, kind: input, shape index: {}]
  %s8 = inlined_call_operand.vmem [shape: f32[8,1], index: 8, kind: input, shape index: {}]
  %s9 = inlined_call_operand.vmem [shape: f32[8,8], index: 9, kind: input, shape index: {}]
  %s10 = inlined_call_operand.hbm [shape: f32[2,8,128], index: 10, kind: output, shape index: {}]
  %s11 = sld [smem:[#allocation0]]
  $region73: #{tpu_custom_call.1} parent=0
    _
  %s13 = ssub.s32 1, %s11
  %s14 = scalar_select 0, %s13, %s11
  $region1: #{tpu_custom_call.1} parent=0
    #allocation2 [shape = 'u8[8192]{0}', space=vmem, size = 0x2000, scoped, tag = 'output window, operand 0']
    #allocation3 [shape = 's32[2]{0}', space=sflag, size = 0x8, scoped, tag = 'scoped memory for tpu_custom_call.1']
    %15 = vsyncpa [#allocation3], 0
    %s16 = scalar_lea.sflag [#allocation3], 1
    %17 = vsyncpa %s16, 0
    loop: start=0, step=1, limit=4
    $region2: #{tpu_custom_call.1} parent=1 // loop_pre_header
      _
    $region3: #{tpu_custom_call.1} parent=1 // loop_header
      %s19 = sphi 0, %s23
      %p20 = scmp.ge.s32.totalorder %s19, 4
      %s29 = sphi 0, %s31
      %s32 = sphi 0, %s29
      %s33 = sphi 0, %s32
      %s49 = sphi 0, %s33
      %s53 = sphi 0, %s53
      %s55 = sphi 0, %s53
      %s56 = sphi 0, %s55
      %s70 = sphi 0, %s56
      %s74 = sphi 0, %s74
      %s76 = sphi 0, %s74
      %s77 = sphi 0, %s76
      %s91 = sphi 0, %s77
      %s95 = sphi 0, %s95
      %s97 = sphi 0, %s95
      %s98 = sphi 0, %s97
      %s112 = sphi 0, %s98
      %s116 = sphi 0, %s116
      %s118 = sphi 0, %s116
      %s119 = sphi 0, %s118
      %s133 = sphi 0, %s119
      %s137 = sphi 0, %s137
      %s139 = sphi 0, %s137
      %s140 = sphi 0, %s139
      %s154 = sphi 0, %s140
      %s158 = sphi 0, %s158
      %s160 = sphi 0, %s158
      %s161 = sphi 0, %s160
      %s175 = sphi 0, %s161
      %s179 = sphi 0, %s179
      %s181 = sphi 0, %s179
      %s182 = sphi 0, %s181
      %s196 = sphi 0, %s182
      %s200 = sphi 0, %s200
      %s202 = sphi 0, %s200
      %s203 = sphi 0, %s202
      %s217 = sphi 0, %s203
      %s221 = sphi 0, %s221
      %s223 = sphi 0, %s221
      %s224 = sphi 0, %s223
      %s238 = sphi 0, %s224
      %s244 = sphi 0, %s246
      %s247 = sphi 0, %s244
      %s248 = sphi 0, %s247
      %s264 = sphi 0, %s248
    $region4: #{tpu_custom_call.1} parent=1 // loop_header_branch
      %22 = sbr.rel (%p20) target = $region8
    $region5: #{tpu_custom_call.1} parent=1 // loop_body
      %s24 = ssub.s32 %s19, 1
      %s25 = ssub.s32 %s19, 2
      %s26 = sadd.s32 %s19, 1
      %s27 = ssub.s32 %s19, %s26
      %p28 = scmp.eq.s32.totalorder %s27, 0
      %s30 = sadd.s32 %s29, 1
      %s31 = scalar_select %p28, %s29, %s30
      %p34 = pneg %p28
      %p35 = scmp.eq.s32.totalorder %s19, 1
      %p36 = por %p34, %p35
      %p37 = scmp.ne.s32.totalorder %s29, %s32
      %p38 = scmp.eq.s32.totalorder %s19, 0
      %p39 = por %p37, %p38
      %p40 = scmp.ne.s32.totalorder %s29, %s32
      %p41 = scmp.eq.s32.totalorder %s24, 1
      %p42 = por %p40, %p41
      %p43 = scmp.ne.s32.totalorder %s32, %s33
      %p44 = scmp.eq.s32.totalorder %s24, 0
      %p45 = por %p43, %p44
      %p46 = scmp.ne.s32.totalorder %s32, %s33
      %p47 = scmp.eq.s32.totalorder %s25, 1
      %p48 = por %p46, %p47
      %p50 = scmp.ne.s32.totalorder %s33, %s49
      %p51 = scmp.eq.s32.totalorder %s25, 0
      %p52 = por %p50, %p51
      %s54 = sadd.s32 %s53, 1
      %p57 = scmp.eq.s32.totalorder %s19, 1
      %p58 = scmp.ne.s32.totalorder %s53, %s55
      %p59 = scmp.eq.s32.totalorder %s19, 0
      %p60 = por %p58, %p59
      %p61 = scmp.ne.s32.totalorder %s53, %s55
      %p62 = scmp.eq.s32.totalorder %s24, 1
      %p63 = por %p61, %p62
      %p64 = scmp.ne.s32.totalorder %s55, %s56
      %p65 = scmp.eq.s32.totalorder %s24, 0
      %p66 = por %p64, %p65
      %p67 = scmp.ne.s32.totalorder %s55, %s56
      %p68 = scmp.eq.s32.totalorder %s25, 1
      %p69 = por %p67, %p68
      %p71 = scmp.ne.s32.totalorder %s56, %s70
      %p72 = scmp.eq.s32.totalorder %s25, 0
      %p73 = por %p71, %p72
      %s75 = sadd.s32 %s74, 1
      %p78 = scmp.eq.s32.totalorder %s19, 1
      %p79 = scmp.ne.s32.totalorder %s74, %s76
      %p80 = scmp.eq.s32.totalorder %s19, 0
      %p81 = por %p79, %p80
      %p82 = scmp.ne.s32.totalorder %s74, %s76
      %p83 = scmp.eq.s32.totalorder %s24, 1
      %p84 = por %p82, %p83
      %p85 = scmp.ne.s32.totalorder %s76, %s77
      %p86 = scmp.eq.s32.totalorder %s24, 0
      %p87 = por %p85, %p86
      %p88 = scmp.ne.s32.totalorder %s76, %s77
      %p89 = scmp.eq.s32.totalorder %s25, 1
      %p90 = por %p88, %p89
      %p92 = scmp.ne.s32.totalorder %s77, %s91
      %p93 = scmp.eq.s32.totalorder %s25, 0
      %p94 = por %p92, %p93
      %s96 = sadd.s32 %s95, 1
      %p99 = scmp.eq.s32.totalorder %s19, 1
      %p100 = scmp.ne.s32.totalorder %s95, %s97
      %p101 = scmp.eq.s32.totalorder %s19, 0
      %p102 = por %p100, %p101
      %p103 = scmp.ne.s32.totalorder %s95, %s97
      %p104 = scmp.eq.s32.totalorder %s24, 1
      %p105 = por %p103, %p104
      %p106 = scmp.ne.s32.totalorder %s97, %s98
      %p107 = scmp.eq.s32.totalorder %s24, 0
      %p108 = por %p106, %p107
      %p109 = scmp.ne.s32.totalorder %s97, %s98
      %p110 = scmp.eq.s32.totalorder %s25, 1
      %p111 = por %p109, %p110
      %p113 = scmp.ne.s32.totalorder %s98, %s112
      %p114 = scmp.eq.s32.totalorder %s25, 0
      %p115 = por %p113, %p114
      %s117 = sadd.s32 %s116, 1
      %p120 = scmp.eq.s32.totalorder %s19, 1
      %p121 = scmp.ne.s32.totalorder %s116, %s118
      %p122 = scmp.eq.s32.totalorder %s19, 0
      %p123 = por %p121, %p122
      %p124 = scmp.ne.s32.totalorder %s116, %s118
      %p125 = scmp.eq.s32.totalorder %s24, 1
      %p126 = por %p124, %p125
      %p127 = scmp.ne.s32.totalorder %s118, %s119
      %p128 = scmp.eq.s32.totalorder %s24, 0
      %p129 = por %p127, %p128
      %p130 = scmp.ne.s32.totalorder %s118, %s119
      %p131 = scmp.eq.s32.totalorder %s25, 1
      %p132 = por %p130, %p131
      %p134 = scmp.ne.s32.totalorder %s119, %s133
      %p135 = scmp.eq.s32.totalorder %s25, 0
      %p136 = por %p134, %p135
      %s138 = sadd.s32 %s137, 1
      %p141 = scmp.eq.s32.totalorder %s19, 1
      %p142 = scmp.ne.s32.totalorder %s137, %s139
      %p143 = scmp.eq.s32.totalorder %s19, 0
      %p144 = por %p142, %p143
      %p145 = scmp.ne.s32.totalorder %s137, %s139
      %p146 = scmp.eq.s32.totalorder %s24, 1
      %p147 = por %p145, %p146
      %p148 = scmp.ne.s32.totalorder %s139, %s140
      %p149 = scmp.eq.s32.totalorder %s24, 0
      %p150 = por %p148, %p149
      %p151 = scmp.ne.s32.totalorder %s139, %s140
      %p152 = scmp.eq.s32.totalorder %s25, 1
      %p153 = por %p151, %p152
      %p155 = scmp.ne.s32.totalorder %s140, %s154
      %p156 = scmp.eq.s32.totalorder %s25, 0
      %p157 = por %p155, %p156
      %s159 = sadd.s32 %s158, 1
      %p162 = scmp.eq.s32.totalorder %s19, 1
      %p163 = scmp.ne.s32.totalorder %s158, %s160
      %p164 = scmp.eq.s32.totalorder %s19, 0
      %p165 = por %p163, %p164
      %p166 = scmp.ne.s32.totalorder %s158, %s160
      %p167 = scmp.eq.s32.totalorder %s24, 1
      %p168 = por %p166, %p167
      %p169 = scmp.ne.s32.totalorder %s160, %s161
      %p170 = scmp.eq.s32.totalorder %s24, 0
      %p171 = por %p169, %p170
      %p172 = scmp.ne.s32.totalorder %s160, %s161
      %p173 = scmp.eq.s32.totalorder %s25, 1
      %p174 = por %p172, %p173
      %p176 = scmp.ne.s32.totalorder %s161, %s175
      %p177 = scmp.eq.s32.totalorder %s25, 0
      %p178 = por %p176, %p177
      %s180 = sadd.s32 %s179, 1
      %p183 = scmp.eq.s32.totalorder %s19, 1
      %p184 = scmp.ne.s32.totalorder %s179, %s181
      %p185 = scmp.eq.s32.totalorder %s19, 0
      %p186 = por %p184, %p185
      %p187 = scmp.ne.s32.totalorder %s179, %s181
      %p188 = scmp.eq.s32.totalorder %s24, 1
      %p189 = por %p187, %p188
      %p190 = scmp.ne.s32.totalorder %s181, %s182
      %p191 = scmp.eq.s32.totalorder %s24, 0
      %p192 = por %p190, %p191
      %p193 = scmp.ne.s32.totalorder %s181, %s182
      %p194 = scmp.eq.s32.totalorder %s25, 1
      %p195 = por %p193, %p194
      %p197 = scmp.ne.s32.totalorder %s182, %s196
      %p198 = scmp.eq.s32.totalorder %s25, 0
      %p199 = por %p197, %p198
      %s201 = sadd.s32 %s200, 1
      %p204 = scmp.eq.s32.totalorder %s19, 1
      %p205 = scmp.ne.s32.totalorder %s200, %s202
      %p206 = scmp.eq.s32.totalorder %s19, 0
      %p207 = por %p205, %p206
      %p208 = scmp.ne.s32.totalorder %s200, %s202
      %p209 = scmp.eq.s32.totalorder %s24, 1
      %p210 = por %p208, %p209
      %p211 = scmp.ne.s32.totalorder %s202, %s203
      %p212 = scmp.eq.s32.totalorder %s24, 0
      %p213 = por %p211, %p212
      %p214 = scmp.ne.s32.totalorder %s202, %s203
      %p215 = scmp.eq.s32.totalorder %s25, 1
      %p216 = por %p214, %p215
      %p218 = scmp.ne.s32.totalorder %s203, %s217
      %p219 = scmp.eq.s32.totalorder %s25, 0
      %p220 = por %p218, %p219
      %s222 = sadd.s32 %s221, 1
      %p225 = scmp.eq.s32.totalorder %s19, 1
      %p226 = scmp.ne.s32.totalorder %s221, %s223
      %p227 = scmp.eq.s32.totalorder %s19, 0
      %p228 = por %p226, %p227
      %p229 = scmp.ne.s32.totalorder %s221, %s223
      %p230 = scmp.eq.s32.totalorder %s24, 1
      %p231 = por %p229, %p230
      %p232 = scmp.ne.s32.totalorder %s223, %s224
      %p233 = scmp.eq.s32.totalorder %s24, 0
      %p234 = por %p232, %p233
      %p235 = scmp.ne.s32.totalorder %s223, %s224
      %p236 = scmp.eq.s32.totalorder %s25, 1
      %p237 = por %p235, %p236
      %p239 = scmp.ne.s32.totalorder %s224, %s238
      %p240 = scmp.eq.s32.totalorder %s25, 0
      %p241 = por %p239, %p240
      %s242 = ssub.s32 %s19, %s26
      %p243 = scmp.eq.s32.totalorder %s242, 0
      %s245 = sadd.s32 %s244, 1
      %s246 = scalar_select %p243, %s244, %s245
      %p249 = pneg %p243
      %p250 = scmp.eq.s32.totalorder %s19, 1
      %p251 = por %p249, %p250
      %p252 = scmp.ne.s32.totalorder %s244, %s247
      %p253 = scmp.eq.s32.totalorder %s19, 0
      %p254 = por %p252, %p253
      %p255 = scmp.ne.s32.totalorder %s244, %s247
      %p256 = scmp.eq.s32.totalorder %s24, 1
      %p257 = por %p255, %p256
      %p258 = scmp.ne.s32.totalorder %s247, %s248
      %p259 = scmp.eq.s32.totalorder %s24, 0
      %p260 = por %p258, %p259
      %p261 = scmp.ne.s32.totalorder %s247, %s248
      %p262 = scmp.eq.s32.totalorder %s25, 1
      %p263 = por %p261, %p262
      %p265 = scmp.ne.s32.totalorder %s248, %s264
      %p266 = scmp.eq.s32.totalorder %s25, 0
      %p267 = por %p265, %p266
      %p268 = scmp.le.s32.totalorder 1, %s19
      %p269 = scmp.lt.s32.totalorder %s19, 3
      %p270 = pnand %p268, %p269
      %p271 = pneg %p270
      // Predicated region
      $region9: #{tpu_custom_call.1} parent=5 // pred_check
        _
      $region10: #{tpu_custom_call.1} parent=5 // pred_check_branch
        %273 = sbr.rel (%p270) target = $region12
      $region11: #{tpu_custom_call.1} parent=5 // pred_region
        %s274 = ssub.s32 %s19, 1
        // Predicated region
        $region13: #{tpu_custom_call.1} parent=11 // pred_check
          %p275 = pneg %p66
        $region14: #{tpu_custom_call.1} parent=11 // pred_check_branch
          %277 = sbr.rel (%p275) target = $region16
        $region15: #{tpu_custom_call.1} parent=11 // pred_region
          _
        $region16: #{tpu_custom_call.1} parent=11 // pred_fallthru
          _
        // Predicated region
        $region17: #{tpu_custom_call.1} parent=11 // pred_check
          %p278 = pneg %p87
        $region18: #{tpu_custom_call.1} parent=11 // pred_check_branch
          %280 = sbr.rel (%p278) target = $region20
        $region19: #{tpu_custom_call.1} parent=11 // pred_region
          _
        $region20: #{tpu_custom_call.1} parent=11 // pred_fallthru
          _
        // Predicated region
        $region21: #{tpu_custom_call.1} parent=11 // pred_check
          %p281 = pneg %p108
        $region22: #{tpu_custom_call.1} parent=11 // pred_check_branch
          %283 = sbr.rel (%p281) target = $region24
        $region23: #{tpu_custom_call.1} parent=11 // pred_region
          _
        $region24: #{tpu_custom_call.1} parent=11 // pred_fallthru
          _
        // Predicated region
        $region25: #{tpu_custom_call.1} parent=11 // pred_check
          %p284 = pneg %p129
        $region26: #{tpu_custom_call.1} parent=11 // pred_check_branch
          %286 = sbr.rel (%p284) target = $region28
        $region27: #{tpu_custom_call.1} parent=11 // pred_region
          _
        $region28: #{tpu_custom_call.1} parent=11 // pred_fallthru
          _
        // Predicated region
        $region29: #{tpu_custom_call.1} parent=11 // pred_check
          %p287 = pneg %p150
        $region30: #{tpu_custom_call.1} parent=11 // pred_check_branch
          %289 = sbr.rel (%p287) target = $region32
        $region31: #{tpu_custom_call.1} parent=11 // pred_region
          _
        $region32: #{tpu_custom_call.1} parent=11 // pred_fallthru
          _
        // Predicated region
        $region33: #{tpu_custom_call.1} parent=11 // pred_check
          %p290 = pneg %p171
        $region34: #{tpu_custom_call.1} parent=11 // pred_check_branch
          %292 = sbr.rel (%p290) target = $region36
        $region35: #{tpu_custom_call.1} parent=11 // pred_region
          _
        $region36: #{tpu_custom_call.1} parent=11 // pred_fallthru
          _
        // Predicated region
        $region37: #{tpu_custom_call.1} parent=11 // pred_check
          %p293 = pneg %p192
        $region38: #{tpu_custom_call.1} parent=11 // pred_check_branch
          %295 = sbr.rel (%p293) target = $region40
        $region39: #{tpu_custom_call.1} parent=11 // pred_region
          _
        $region40: #{tpu_custom_call.1} parent=11 // pred_fallthru
          _
        // Predicated region
        $region41: #{tpu_custom_call.1} parent=11 // pred_check
          %p296 = pneg %p213
        $region42: #{tpu_custom_call.1} parent=11 // pred_check_branch
          %298 = sbr.rel (%p296) target = $region44
        $region43: #{tpu_custom_call.1} parent=11 // pred_region
          _
        $region44: #{tpu_custom_call.1} parent=11 // pred_fallthru
          _
        // Predicated region
        $region45: #{tpu_custom_call.1} parent=11 // pred_check
          %p299 = pneg %p234
        $region46: #{tpu_custom_call.1} parent=11 // pred_check_branch
          %301 = sbr.rel (%p299) target = $region48
        $region47: #{tpu_custom_call.1} parent=11 // pred_region
          _
        $region48: #{tpu_custom_call.1} parent=11 // pred_fallthru
          _
      $region12: #{tpu_custom_call.1} parent=5 // pred_fallthru
        _
      %p302 = scmp.lt.s32.totalorder %s19, 2
      // Predicated region
      $region49: #{tpu_custom_call.1} parent=5 // pred_check
        %p303 = pneg %p302
      $region50: #{tpu_custom_call.1} parent=5 // pred_check_branch
        %305 = sbr.rel (%p303) target = $region52
      $region51: #{tpu_custom_call.1} parent=5 // pred_region
        // Predicated region
        $region53: #{tpu_custom_call.1} parent=51 // pred_check
          %p306 = pneg %p39
        $region54: #{tpu_custom_call.1} parent=51 // pred_check_branch
          %308 = sbr.rel (%p306) target = $region56
        $region55: #{tpu_custom_call.1} parent=51 // pred_region
          %p309 = scmp.lt.s32.totalorder %s19, 1
          %s310 = scalar_select %p309, %s19, 1
          %s311 = smul.addr %s310, 3
          %s312 = smul.addr %s311, 8
          %s313 = scalar_lea.vmem %s0, %s312
        $region56: #{tpu_custom_call.1} parent=51 // pred_fallthru
          _
      $region52: #{tpu_custom_call.1} parent=5 // pred_fallthru
        _
      %p314 = scmp.le.s32.totalorder 1, %s19
      %p315 = scmp.lt.s32.totalorder %s19, 3
      %p316 = pnand %p314, %p315
      %p317 = pneg %p316
      // Predicated region
      $region57: #{tpu_custom_call.1} parent=5 // pred_check
        _
      $region58: #{tpu_custom_call.1} parent=5 // pred_check_branch
        %319 = sbr.rel (%p316) target = $region60
      $region59: #{tpu_custom_call.1} parent=5 // pred_region
        %s320 = ssub.s32 %s19, 1
        %p321 = scmp.lt.s32.totalorder %s24, 1
        %s322 = scalar_select %p321, %s24, 1
        %s323 = smul.addr %s322, 3
        %s324 = smul.addr %s323, 8
        %s325 = scalar_lea.vmem %s0, %s324
        %p326 = pneg %p45
        %p327 = pneg %p42
        %p328 = pneg %p66
        %p329 = pneg %p63
        %p330 = pneg %p87
        %p331 = pneg %p84
        %p332 = pneg %p108
        %p333 = pneg %p105
        %p334 = pneg %p129
        %p335 = pneg %p126
        %p336 = pneg %p150
        %p337 = pneg %p147
        %p338 = pneg %p171
        %p339 = pneg %p168
        %p340 = pneg %p192
        %p341 = pneg %p189
        %p342 = pneg %p213
        %p343 = pneg %p210
        %p344 = pneg %p234
        %p345 = pneg %p231
        %p346 = pneg %p260
        %p347 = pneg %p257
        %s348 = sand.u32 %s247, 1
        %s349 = scalar_lea.sflag [#allocation3], %s348
        %s350 = sand.u32 %s247, 1
        %s351 = smul.addr %s350, 8
        %s352 = scalar_lea.vmem [#allocation2], %s351
        %p353 = scmp.lt.s32.totalorder %s24, 1
        %s354 = scalar_select %p353, %s24, 1
        %s355 = smul.addr %s354, 3
        %s356 = smul.addr %s355, 8
        %s357 = scalar_lea.vmem %s0, %s356
        %v358 = vlaneseq
        %v359 = vand.u32 %v358, 127
        %vm360 = vcmp.lt.s32.totalorder %v359, 16
        %v361 = vsel %vm360, 1, 0
        %v362 = vcvt.s32.f32 %v361
        %v363 = vld [vmem:[%s1] sm:$0xff]
        %v364 = vld [vmem:[%s1 + $0x8] sm:$0xff]
        %v365 = vld [vmem:[%s357] sm:$0xff]
        %v366 = vld [vmem:[%s357 + $0x8] sm:$0xff]
        %v367 = vld [vmem:[%s357 + $0x10] sm:$0xf]
        %v368 = vld [vmem:[%s2] sm:$0xff]
        %v369 = vld [vmem:[%s2 + $0x8] sm:$0xff]
        %371 = vset.pattern.permute.xlu0 0
        %372 = vperm.xlu0 %371, %v368
        %v373 = vpop.permute.xlu0 %372
        %376 = vset.pattern.permute.xlu0 0
        %377 = vperm.xlu0 %376, %v369
        %v378 = vpop.permute.xlu0 %377
        %vm380 = vcmask 162816
        %v382 = vsel %vm380, %v363, 0
        %v385 = vsel %vm380, %v364, 0
        %vm387 = vcmask 1043456
        %v389 = vsel %vm387, %v367, 0
        %391 = vmatprep.subr.mxu0 0.0
        %392 = vmatpush1.msra.mxu0 %v365
        %393 = vmatprep.subr.mxu0 0.0
        %394 = vmatpush1.msra.mxu0 %v366
        %395 = vmatprep.subr.mxu0 0.0
        %396 = vmatpush1.msra.mxu0 %v389
        %397 = vmatprep.subr.mxu0 0.0
        %398 = vmatpush1.msra.mxu0 0.0
        %399 = vmatprep.subr.mxu0 0.0
        %400 = vmatpush1.msra.mxu0 0.0
        %401 = vmatprep.subr.mxu0 0.0
        %402 = vmatpush1.msra.mxu0 0.0
        %403 = vmatprep.subr.mxu0 0.0
        %404 = vmatpush1.msra.mxu0 0.0
        %405 = vmatprep.subr.mxu0 0.0
        %406 = vmatpush1.msra.mxu0 0.0
        %407 = vmatprep.subr.mxu0 0.0
        %408 = vmatpush1.msra.mxu0 0.0
        %409 = vmatprep.subr.mxu0 0.0
        %410 = vmatpush1.msra.mxu0 0.0
        %411 = vmatprep.subr.mxu0 0.0
        %412 = vmatpush1.msra.mxu0 0.0
        %413 = vmatprep.subr.mxu0 0.0
        %414 = vmatpush1.msra.mxu0 0.0
        %415 = vmatprep.subr.mxu0 0.0
        %416 = vmatpush1.msra.mxu0 0.0
        %417 = vmatprep.subr.mxu0 0.0
        %418 = vmatpush1.msra.mxu0 0.0
        %419 = vmatprep.subr.mxu0 0.0
        %420 = vmatpush1.msra.mxu0 0.0
        %421 = vmatprep.subr.mxu0 0.0
        %422 = vmatpush1.msra.mxu0 0.0
        %423 = vmatprep.subr.mxu0 0.0
        %424 = vmatpush1.msra.mxu0 0.0
        %425 = vmatprep.subr.mxu0 0.0
        %426 = vmatpush1.msra.mxu0 0.0
        %427 = vmatprep.subr.mxu0 0.0
        %428 = vmatpush1.msra.mxu0 0.0
        %429 = vmatprep.subr.mxu0 0.0
        %430 = vmatpush1.msra.mxu0 0.0
        %431 = vmatprep.subr.mxu0 0.0
        %432 = vmatpush1.msra.mxu0 0.0
        %433 = vmatprep.subr.mxu0 0.0
        %434 = vmatpush1.msra.mxu0 0.0
        %435 = vmatprep.subr.mxu0 0.0
        %436 = vmatpush1.msra.mxu0 0.0
        %437 = vmatprep.subr.mxu0 0.0
        %438 = vmatpush1.msra.mxu0 0.0
        %439 = vmatprep.subr.mxu0 0.0
        %440 = vmatpush1.msra.mxu0 0.0
        %441 = vmatprep.subr.mxu0 0.0
        %442 = vmatpush1.msra.mxu0 0.0
        %443 = vmatprep.subr.mxu0 0.0
        %444 = vmatpush1.msra.mxu0 0.0
        %445 = vmatprep.subr.mxu0 0.0
        %446 = vmatpush1.msra.mxu0 0.0
        %447 = vmatprep.subr.mxu0 0.0
        %448 = vmatpush1.msra.mxu0 0.0
        %449 = vmatprep.subr.mxu0 0.0
        %450 = vmatpush1.msra.mxu0 0.0
        %451 = vmatprep.subr.mxu0 0.0
        %452 = vmatpush1.msra.mxu0 0.0
        %453 = vmatprep.subr.mxu0 0.0
        %454 = vmatpush1.msra.mxu0 0.0
        %455 = vmatprep.mubr.f32.mxu0 0.0
        %456 = vmatmul.mubr.f32.gmra.mrb[0].mxu0 %v382
        %v457 = vpop.f32.mrb[0].mxu0
        %v458 = vadd.f32 %v373, %v457
        %v459 = vpop.f32.mrb[0].mxu0
        %460 = vmatprep.mubr.f32.mxu0 0.0
        %461 = vmatmul.mubr.f32.gmra.mrb[0].mxu0 %v385
        %v462 = vpop.f32.mrb[0].mxu0
        %v463 = vadd.f32 %v378, %v462
        %v464 = vpop.f32.mrb[0].mxu0
        %465 = vdwg.mxu0
        %v466 = vld [vmem:[%s3] sm:$0xff]
        %v467 = vld [vmem:[%s4] sm:$0xff]
        %v468 = vmul.f32 %v458, %v362
        %469 = vadd.xlane.f32.xlu0 %v468
        %v470 = vpop.xlane.xlu0 %469
        %v471 = vmul.f32 %v468, %v468
        %472 = vadd.xlane.f32.xlu0 %v471
        %v473 = vpop.xlane.xlu0 %472
        %v474 = vld [vmem:[%s9] sm:$0xff]
        %vm475 = vcmask 64512
        %v477 = vsel %vm475, %v474, 0
        %479 = vmatprep.subr.mxu0 0.0
        %480 = vmatpush1.msra.mxu0 %v470
        %481 = vmatprep.subr.mxu0 0.0
        %482 = vmatpush1.msra.mxu0 0.0
        %483 = vmatprep.subr.mxu0 0.0
        %484 = vmatpush1.msra.mxu0 0.0
        %485 = vmatprep.subr.mxu0 0.0
        %486 = vmatpush1.msra.mxu0 0.0
        %487 = vmatprep.subr.mxu0 0.0
        %488 = vmatpush1.msra.mxu0 0.0
        %489 = vmatprep.subr.mxu0 0.0
        %490 = vmatpush1.msra.mxu0 0.0
        %491 = vmatprep.subr.mxu0 0.0
        %492 = vmatpush1.msra.mxu0 0.0
        %493 = vmatprep.subr.mxu0 0.0
        %494 = vmatpush1.msra.mxu0 0.0
        %495 = vmatprep.subr.mxu0 0.0
        %496 = vmatpush1.msra.mxu0 0.0
        %497 = vmatprep.subr.mxu0 0.0
        %498 = vmatpush1.msra.mxu0 0.0
        %499 = vmatprep.subr.mxu0 0.0
        %500 = vmatpush1.msra.mxu0 0.0
        %501 = vmatprep.subr.mxu0 0.0
        %502 = vmatpush1.msra.mxu0 0.0
        %503 = vmatprep.subr.mxu0 0.0
        %504 = vmatpush1.msra.mxu0 0.0
        %505 = vmatprep.subr.mxu0 0.0
        %506 = vmatpush1.msra.mxu0 0.0
        %507 = vmatprep.subr.mxu0 0.0
        %508 = vmatpush1.msra.mxu0 0.0
        %509 = vmatprep.subr.mxu0 0.0
        %510 = vmatpush1.msra.mxu0 0.0
        %511 = vmatprep.subr.mxu0 0.0
        %512 = vmatpush1.msra.mxu0 0.0
        %513 = vmatprep.subr.mxu0 0.0
        %514 = vmatpush1.msra.mxu0 0.0
        %515 = vmatprep.subr.mxu0 0.0
        %516 = vmatpush1.msra.mxu0 0.0
        %517 = vmatprep.subr.mxu0 0.0
        %518 = vmatpush1.msra.mxu0 0.0
        %519 = vmatprep.subr.mxu0 0.0
        %520 = vmatpush1.msra.mxu0 0.0
        %521 = vmatprep.subr.mxu0 0.0
        %522 = vmatpush1.msra.mxu0 0.0
        %523 = vmatprep.subr.mxu0 0.0
        %524 = vmatpush1.msra.mxu0 0.0
        %525 = vmatprep.subr.mxu0 0.0
        %526 = vmatpush1.msra.mxu0 0.0
        %527 = vmatprep.subr.mxu0 0.0
        %528 = vmatpush1.msra.mxu0 0.0
        %529 = vmatprep.subr.mxu0 0.0
        %530 = vmatpush1.msra.mxu0 0.0
        %531 = vmatprep.subr.mxu0 0.0
        %532 = vmatpush1.msra.mxu0 0.0
        %533 = vmatprep.subr.mxu0 0.0
        %534 = vmatpush1.msra.mxu0 0.0
        %535 = vmatprep.subr.mxu0 0.0
        %536 = vmatpush1.msra.mxu0 0.0
        %537 = vmatprep.subr.mxu0 0.0
        %538 = vmatpush1.msra.mxu0 0.0
        %539 = vmatprep.subr.mxu0 0.0
        %540 = vmatpush1.msra.mxu0 0.0
        %541 = vmatprep.subr.mxu0 0.0
        %542 = vmatpush1.msra.mxu0 0.0
        %543 = vmatprep.mubr.f32.mxu0 0.0
        %544 = vmatmul.mubr.f32.gmra.mrb[0].mxu0 %v477
        %v545 = vpop.f32.mrb[0].mxu0
        %v546 = vadd.f32 0.0, %v545
        %v547 = vpop.f32.mrb[0].mxu0
        %548 = vdwg.mxu0
        %549 = vmatprep.subr.mxu0 0.0
        %550 = vmatpush1.msra.mxu0 %v473
        %551 = vmatprep.subr.mxu0 0.0
        %552 = vmatpush1.msra.mxu0 0.0
        %553 = vmatprep.subr.mxu0 0.0
        %554 = vmatpush1.msra.mxu0 0.0
        %555 = vmatprep.subr.mxu0 0.0
        %556 = vmatpush1.msra.mxu0 0.0
        %557 = vmatprep.subr.mxu0 0.0
        %558 = vmatpush1.msra.mxu0 0.0
        %559 = vmatprep.subr.mxu0 0.0
        %560 = vmatpush1.msra.mxu0 0.0
        %561 = vmatprep.subr.mxu0 0.0
        %562 = vmatpush1.msra.mxu0 0.0
        %563 = vmatprep.subr.mxu0 0.0
        %564 = vmatpush1.msra.mxu0 0.0
        %565 = vmatprep.subr.mxu0 0.0
        %566 = vmatpush1.msra.mxu0 0.0
        %567 = vmatprep.subr.mxu0 0.0
        %568 = vmatpush1.msra.mxu0 0.0
        %569 = vmatprep.subr.mxu0 0.0
        %570 = vmatpush1.msra.mxu0 0.0
        %571 = vmatprep.subr.mxu0 0.0
        %572 = vmatpush1.msra.mxu0 0.0
        %573 = vmatprep.subr.mxu0 0.0
        %574 = vmatpush1.msra.mxu0 0.0
        %575 = vmatprep.subr.mxu0 0.0
        %576 = vmatpush1.msra.mxu0 0.0
        %577 = vmatprep.subr.mxu0 0.0
        %578 = vmatpush1.msra.mxu0 0.0
        %579 = vmatprep.subr.mxu0 0.0
        %580 = vmatpush1.msra.mxu0 0.0
        %581 = vmatprep.subr.mxu0 0.0
        %582 = vmatpush1.msra.mxu0 0.0
        %583 = vmatprep.subr.mxu0 0.0
        %584 = vmatpush1.msra.mxu0 0.0
        %585 = vmatprep.subr.mxu0 0.0
        %586 = vmatpush1.msra.mxu0 0.0
        %587 = vmatprep.subr.mxu0 0.0
        %588 = vmatpush1.msra.mxu0 0.0
        %589 = vmatprep.subr.mxu0 0.0
        %590 = vmatpush1.msra.mxu0 0.0
        %591 = vmatprep.subr.mxu0 0.0
        %592 = vmatpush1.msra.mxu0 0.0
        %593 = vmatprep.subr.mxu0 0.0
        %594 = vmatpush1.msra.mxu0 0.0
        %595 = vmatprep.subr.mxu0 0.0
        %596 = vmatpush1.msra.mxu0 0.0
        %597 = vmatprep.subr.mxu0 0.0
        %598 = vmatpush1.msra.mxu0 0.0
        %599 = vmatprep.subr.mxu0 0.0
        %600 = vmatpush1.msra.mxu0 0.0
        %601 = vmatprep.subr.mxu0 0.0
        %602 = vmatpush1.msra.mxu0 0.0
        %603 = vmatprep.subr.mxu0 0.0
        %604 = vmatpush1.msra.mxu0 0.0
        %605 = vmatprep.subr.mxu0 0.0
        %606 = vmatpush1.msra.mxu0 0.0
        %607 = vmatprep.subr.mxu0 0.0
        %608 = vmatpush1.msra.mxu0 0.0
        %609 = vmatprep.subr.mxu0 0.0
        %610 = vmatpush1.msra.mxu0 0.0
        %611 = vmatprep.subr.mxu0 0.0
        %612 = vmatpush1.msra.mxu0 0.0
        %613 = vmatprep.mubr.f32.mxu0 0.0
        %614 = vmatmul.mubr.f32.gmra.mrb[0].mxu0 %v477
        %v615 = vpop.f32.mrb[0].mxu0
        %v616 = vadd.f32 0.0, %v615
        %v617 = vpop.f32.mrb[0].mxu0
        %618 = vdwg.mxu0
        %v619 = vmul.f32 %v546, %v546
        %v620 = vsub.f32 %v616, %v619
        %622 = vset.pattern.permute.xlu0 0
        %623 = vperm.xlu0 %622, %v546
        %v624 = vpop.permute.xlu0 %623
        %v626 = vsub.f32 %v458, %v624
        %v627 = vadd.f32 %v620, 1e-05
        %v628 = vrsqrt.pop %v627
        %630 = vset.pattern.permute.xlu0 0
        %631 = vperm.xlu0 %630, %v628
        %v632 = vpop.permute.xlu0 %631
        %v634 = vmul.f32 %v626, %v632
        %636 = vset.pattern.permute.xlu0 0
        %637 = vperm.xlu0 %636, %v466
        %v638 = vpop.permute.xlu0 %637
        %v640 = vmul.f32 %v634, %v638
        %642 = vset.pattern.permute.xlu0 0
        %643 = vperm.xlu0 %642, %v467
        %v644 = vpop.permute.xlu0 %643
        %v646 = vadd.f32 %v640, %v644
        %v647 = vmin.f32 %v646, 20.0
        %v648 = vmul.f32 %v647, 1.442695
        %v649 = vpow.pop %v648
        %v650 = vadd.f32 %v649, 1.0
        %v651 = vmul.f32 %v650, %v650
        %vm652 = vcmp.gt.f32.partialorder %v646, 20.0
        %v653 = vsub.f32 %v651, 1.0
        %v654 = vmul.f32 %v646, %v653
        %v655 = vadd.f32 %v651, 1.0
        %v656 = vrcp.pop %v655
        %v657 = vmul.f32 %v654, %v656
        %v658 = vsel %vm652, %v646, %v657
        %v659 = vmul.f32 %v658, %v362
        %661 = vrot.lane.b32.xlu0 %v659, 2
        %v662 = vpop.permute.xlu0 %661
        %vm664 = vcmask 15360
        %v665 = vsel %vm664, 0.0, %v662
        %v666 = vsel %vm664, %v662, 0.0
        %669 = vrot.lane.b32.xlu0 %v665, 127
        %v670 = vpop.permute.xlu0 %669
        %671 = vrot.lane.b32.xlu0 %v666, 127
        %v672 = vpop.permute.xlu0 %671
        %vm673 = vcmask 1039360
        %v674 = vsel %vm673, %v670, %v672
        %676 = vrot.lane.b32.xlu0 %v665, 126
        %v677 = vpop.permute.xlu0 %676
        %678 = vrot.lane.b32.xlu0 %v666, 126
        %v679 = vpop.permute.xlu0 %678
        %vm680 = vcmask 1031168
        %v681 = vsel %vm680, %v677, %v679
        %683 = vrot.lane.b32.xlu0 %v665, 125
        %v684 = vpop.permute.xlu0 %683
        %685 = vrot.lane.b32.xlu0 %v666, 125
        %v686 = vpop.permute.xlu0 %685
        %vm687 = vcmask 1022976
        %v688 = vsel %vm687, %v684, %v686
        %690 = vrot.lane.b32.xlu0 %v665, 124
        %v691 = vpop.permute.xlu0 %690
        %692 = vrot.lane.b32.xlu0 %v666, 124
        %v693 = vpop.permute.xlu0 %692
        %vm694 = vcmask 1014784
        %v695 = vsel %vm694, %v691, %v693
        %v697 = vld [vmem:[%s5] sm:$0xff]
        %v698 = vld [vmem:[%s6] sm:$0xff]
        %700 = vset.pattern.permute.xlu0 0
        %701 = vperm.xlu0 %700, %v698
        %v702 = vpop.permute.xlu0 %701
        %vm704 = vcmask 326656
        %v706 = vsel %vm704, %v697, 0
        %708 = vmatprep.subr.mxu0 0.0
        %709 = vmatpush1.msra.mxu0 %v665
        %710 = vmatprep.subr.mxu0 0.0
        %711 = vmatpush1.msra.mxu0 %v674
        %712 = vmatprep.subr.mxu0 0.0
        %713 = vmatpush1.msra.mxu0 %v681
        %714 = vmatprep.subr.mxu0 0.0
        %715 = vmatpush1.msra.mxu0 %v688
        %716 = vmatprep.subr.mxu0 0.0
        %717 = vmatpush1.msra.mxu0 %v695
        %718 = vmatprep.subr.mxu0 0.0
        %719 = vmatpush1.msra.mxu0 0.0
        %720 = vmatprep.subr.mxu0 0.0
        %721 = vmatpush1.msra.mxu0 0.0
        %722 = vmatprep.subr.mxu0 0.0
        %723 = vmatpush1.msra.mxu0 0.0
        %724 = vmatprep.subr.mxu0 0.0
        %725 = vmatpush1.msra.mxu0 0.0
        %726 = vmatprep.subr.mxu0 0.0
        %727 = vmatpush1.msra.mxu0 0.0
        %728 = vmatprep.subr.mxu0 0.0
        %729 = vmatpush1.msra.mxu0 0.0
        %730 = vmatprep.subr.mxu0 0.0
        %731 = vmatpush1.msra.mxu0 0.0
        %732 = vmatprep.subr.mxu0 0.0
        %733 = vmatpush1.msra.mxu0 0.0
        %734 = vmatprep.subr.mxu0 0.0
        %735 = vmatpush1.msra.mxu0 0.0
        %736 = vmatprep.subr.mxu0 0.0
        %737 = vmatpush1.msra.mxu0 0.0
        %738 = vmatprep.subr.mxu0 0.0
        %739 = vmatpush1.msra.mxu0 0.0
        %740 = vmatprep.subr.mxu0 0.0
        %741 = vmatpush1.msra.mxu0 0.0
        %742 = vmatprep.subr.mxu0 0.0
        %743 = vmatpush1.msra.mxu0 0.0
        %744 = vmatprep.subr.mxu0 0.0
        %745 = vmatpush1.msra.mxu0 0.0
        %746 = vmatprep.subr.mxu0 0.0
        %747 = vmatpush1.msra.mxu0 0.0
        %748 = vmatprep.subr.mxu0 0.0
        %749 = vmatpush1.msra.mxu0 0.0
        %750 = vmatprep.subr.mxu0 0.0
        %751 = vmatpush1.msra.mxu0 0.0
        %752 = vmatprep.subr.mxu0 0.0
        %753 = vmatpush1.msra.mxu0 0.0
        %754 = vmatprep.subr.mxu0 0.0
        %755 = vmatpush1.msra.mxu0 0.0
        %756 = vmatprep.subr.mxu0 0.0
        %757 = vmatpush1.msra.mxu0 0.0
        %758 = vmatprep.subr.mxu0 0.0
        %759 = vmatpush1.msra.mxu0 0.0
        %760 = vmatprep.subr.mxu0 0.0
        %761 = vmatpush1.msra.mxu0 0.0
        %762 = vmatprep.subr.mxu0 0.0
        %763 = vmatpush1.msra.mxu0 0.0
        %764 = vmatprep.subr.mxu0 0.0
        %765 = vmatpush1.msra.mxu0 0.0
        %766 = vmatprep.subr.mxu0 0.0
        %767 = vmatpush1.msra.mxu0 0.0
        %768 = vmatprep.subr.mxu0 0.0
        %769 = vmatpush1.msra.mxu0 0.0
        %770 = vmatprep.subr.mxu0 0.0
        %771 = vmatpush1.msra.mxu0 0.0
        %772 = vmatprep.mubr.f32.mxu0 0.0
        %773 = vmatmul.mubr.f32.gmra.mrb[0].mxu0 %v706
        %v774 = vpop.f32.mrb[0].mxu0
        %v775 = vadd.f32 %v702, %v774
        %v776 = vpop.f32.mrb[0].mxu0
        %777 = vdwg.mxu0
        %v778 = vld [vmem:[%s7] sm:$0xff]
        %v779 = vld [vmem:[%s8] sm:$0xff]
        %v780 = vmul.f32 %v775, %v362
        %781 = vadd.xlane.f32.xlu0 %v780
        %v782 = vpop.xlane.xlu0 %781
        %v783 = vmul.f32 %v780, %v780
        %784 = vadd.xlane.f32.xlu0 %v783
        %v785 = vpop.xlane.xlu0 %784
        %786 = vmatprep.subr.mxu0 0.0
        %787 = vmatpush1.msra.mxu0 %v782
        %788 = vmatprep.subr.mxu0 0.0
        %789 = vmatpush1.msra.mxu0 0.0
        %790 = vmatprep.subr.mxu0 0.0
        %791 = vmatpush1.msra.mxu0 0.0
        %792 = vmatprep.subr.mxu0 0.0
        %793 = vmatpush1.msra.mxu0 0.0
        %794 = vmatprep.subr.mxu0 0.0
        %795 = vmatpush1.msra.mxu0 0.0
        %796 = vmatprep.subr.mxu0 0.0
        %797 = vmatpush1.msra.mxu0 0.0
        %798 = vmatprep.subr.mxu0 0.0
        %799 = vmatpush1.msra.mxu0 0.0
        %800 = vmatprep.subr.mxu0 0.0
        %801 = vmatpush1.msra.mxu0 0.0
        %802 = vmatprep.subr.mxu0 0.0
        %803 = vmatpush1.msra.mxu0 0.0
        %804 = vmatprep.subr.mxu0 0.0
        %805 = vmatpush1.msra.mxu0 0.0
        %806 = vmatprep.subr.mxu0 0.0
        %807 = vmatpush1.msra.mxu0 0.0
        %808 = vmatprep.subr.mxu0 0.0
        %809 = vmatpush1.msra.mxu0 0.0
        %810 = vmatprep.subr.mxu0 0.0
        %811 = vmatpush1.msra.mxu0 0.0
        %812 = vmatprep.subr.mxu0 0.0
        %813 = vmatpush1.msra.mxu0 0.0
        %814 = vmatprep.subr.mxu0 0.0
        %815 = vmatpush1.msra.mxu0 0.0
        %816 = vmatprep.subr.mxu0 0.0
        %817 = vmatpush1.msra.mxu0 0.0
        %818 = vmatprep.subr.mxu0 0.0
        %819 = vmatpush1.msra.mxu0 0.0
        %820 = vmatprep.subr.mxu0 0.0
        %821 = vmatpush1.msra.mxu0 0.0
        %822 = vmatprep.subr.mxu0 0.0
        %823 = vmatpush1.msra.mxu0 0.0
        %824 = vmatprep.subr.mxu0 0.0
        %825 = vmatpush1.msra.mxu0 0.0
        %826 = vmatprep.subr.mxu0 0.0
        %827 = vmatpush1.msra.mxu0 0.0
        %828 = vmatprep.subr.mxu0 0.0
        %829 = vmatpush1.msra.mxu0 0.0
        %830 = vmatprep.subr.mxu0 0.0
        %831 = vmatpush1.msra.mxu0 0.0
        %832 = vmatprep.subr.mxu0 0.0
        %833 = vmatpush1.msra.mxu0 0.0
        %834 = vmatprep.subr.mxu0 0.0
        %835 = vmatpush1.msra.mxu0 0.0
        %836 = vmatprep.subr.mxu0 0.0
        %837 = vmatpush1.msra.mxu0 0.0
        %838 = vmatprep.subr.mxu0 0.0
        %839 = vmatpush1.msra.mxu0 0.0
        %840 = vmatprep.subr.mxu0 0.0
        %841 = vmatpush1.msra.mxu0 0.0
        %842 = vmatprep.subr.mxu0 0.0
        %843 = vmatpush1.msra.mxu0 0.0
        %844 = vmatprep.subr.mxu0 0.0
        %845 = vmatpush1.msra.mxu0 0.0
        %846 = vmatprep.subr.mxu0 0.0
        %847 = vmatpush1.msra.mxu0 0.0
        %848 = vmatprep.subr.mxu0 0.0
        %849 = vmatpush1.msra.mxu0 0.0
        %850 = vmatprep.mubr.f32.mxu0 0.0
        %851 = vmatmul.mubr.f32.gmra.mrb[0].mxu0 %v477
        %v852 = vpop.f32.mrb[0].mxu0
        %v853 = vadd.f32 0.0, %v852
        %v854 = vpop.f32.mrb[0].mxu0
        %855 = vdwg.mxu0
        %856 = vmatprep.subr.mxu0 0.0
        %857 = vmatpush1.msra.mxu0 %v785
        %858 = vmatprep.subr.mxu0 0.0
        %859 = vmatpush1.msra.mxu0 0.0
        %860 = vmatprep.subr.mxu0 0.0
        %861 = vmatpush1.msra.mxu0 0.0
        %862 = vmatprep.subr.mxu0 0.0
        %863 = vmatpush1.msra.mxu0 0.0
        %864 = vmatprep.subr.mxu0 0.0
        %865 = vmatpush1.msra.mxu0 0.0
        %866 = vmatprep.subr.mxu0 0.0
        %867 = vmatpush1.msra.mxu0 0.0
        %868 = vmatprep.subr.mxu0 0.0
        %869 = vmatpush1.msra.mxu0 0.0
        %870 = vmatprep.subr.mxu0 0.0
        %871 = vmatpush1.msra.mxu0 0.0
        %872 = vmatprep.subr.mxu0 0.0
        %873 = vmatpush1.msra.mxu0 0.0
        %874 = vmatprep.subr.mxu0 0.0
        %875 = vmatpush1.msra.mxu0 0.0
        %876 = vmatprep.subr.mxu0 0.0
        %877 = vmatpush1.msra.mxu0 0.0
        %878 = vmatprep.subr.mxu0 0.0
        %879 = vmatpush1.msra.mxu0 0.0
        %880 = vmatprep.subr.mxu0 0.0
        %881 = vmatpush1.msra.mxu0 0.0
        %882 = vmatprep.subr.mxu0 0.0
        %883 = vmatpush1.msra.mxu0 0.0
        %884 = vmatprep.subr.mxu0 0.0
        %885 = vmatpush1.msra.mxu0 0.0
        %886 = vmatprep.subr.mxu0 0.0
        %887 = vmatpush1.msra.mxu0 0.0
        %888 = vmatprep.subr.mxu0 0.0
        %889 = vmatpush1.msra.mxu0 0.0
        %890 = vmatprep.subr.mxu0 0.0
        %891 = vmatpush1.msra.mxu0 0.0
        %892 = vmatprep.subr.mxu0 0.0
        %893 = vmatpush1.msra.mxu0 0.0
        %894 = vmatprep.subr.mxu0 0.0
        %895 = vmatpush1.msra.mxu0 0.0
        %896 = vmatprep.subr.mxu0 0.0
        %897 = vmatpush1.msra.mxu0 0.0
        %898 = vmatprep.subr.mxu0 0.0
        %899 = vmatpush1.msra.mxu0 0.0
        %900 = vmatprep.subr.mxu0 0.0
        %901 = vmatpush1.msra.mxu0 0.0
        %902 = vmatprep.subr.mxu0 0.0
        %903 = vmatpush1.msra.mxu0 0.0
        %904 = vmatprep.subr.mxu0 0.0
        %905 = vmatpush1.msra.mxu0 0.0
        %906 = vmatprep.subr.mxu0 0.0
        %907 = vmatpush1.msra.mxu0 0.0
        %908 = vmatprep.subr.mxu0 0.0
        %909 = vmatpush1.msra.mxu0 0.0
        %910 = vmatprep.subr.mxu0 0.0
        %911 = vmatpush1.msra.mxu0 0.0
        %912 = vmatprep.subr.mxu0 0.0
        %913 = vmatpush1.msra.mxu0 0.0
        %914 = vmatprep.subr.mxu0 0.0
        %915 = vmatpush1.msra.mxu0 0.0
        %916 = vmatprep.subr.mxu0 0.0
        %917 = vmatpush1.msra.mxu0 0.0
        %918 = vmatprep.subr.mxu0 0.0
        %919 = vmatpush1.msra.mxu0 0.0
        %920 = vmatprep.mubr.f32.mxu0 0.0
        %921 = vmatmul.mubr.f32.gmra.mrb[0].mxu0 %v477
        %v922 = vpop.f32.mrb[0].mxu0
        %v923 = vadd.f32 0.0, %v922
        %v924 = vpop.f32.mrb[0].mxu0
        %925 = vdwg.mxu0
        %v926 = vmul.f32 %v853, %v853
        %v927 = vsub.f32 %v923, %v926
        %929 = vset.pattern.permute.xlu0 0
        %930 = vperm.xlu0 %929, %v853
        %v931 = vpop.permute.xlu0 %930
        %v933 = vsub.f32 %v775, %v931
        %v934 = vadd.f32 %v927, 1e-05
        %v935 = vrsqrt.pop %v934
        %937 = vset.pattern.permute.xlu0 0
        %938 = vperm.xlu0 %937, %v935
        %v939 = vpop.permute.xlu0 %938
        %v941 = vmul.f32 %v933, %v939
        %943 = vset.pattern.permute.xlu0 0
        %944 = vperm.xlu0 %943, %v778
        %v945 = vpop.permute.xlu0 %944
        %v947 = vmul.f32 %v941, %v945
        %949 = vset.pattern.permute.xlu0 0
        %950 = vperm.xlu0 %949, %v779
        %v951 = vpop.permute.xlu0 %950
        %v953 = vadd.f32 %v947, %v951
        %v954 = vmin.f32 %v953, 20.0
        %v955 = vmul.f32 %v954, 1.442695
        %v956 = vpow.pop %v955
        %v957 = vadd.f32 %v956, 1.0
        %v958 = vmul.f32 %v957, %v957
        %vm959 = vcmp.gt.f32.partialorder %v953, 20.0
        %v960 = vsub.f32 %v958, 1.0
        %v961 = vmul.f32 %v953, %v960
        %v962 = vadd.f32 %v958, 1.0
        %v963 = vrcp.pop %v962
        %v964 = vmul.f32 %v961, %v963
        %v965 = vsel %vm959, %v953, %v964
        %v966 = vadd.f32 %v965, %v463
        %967 = vst [vmem:[%s352] sm:$0xff] %v966
        %s968 = sand.u32 %s247, 1
        %s969 = scalar_lea.sflag [#allocation3], %s968
        %s970 = sand.u32 %s247, 1
        %s971 = smul.addr %s970, 8
        %s972 = scalar_lea.vmem [#allocation2], %s971
        // Predicated region
        $region61: #{tpu_custom_call.1} parent=59 // pred_check
          %p973 = pneg %p257
        $region62: #{tpu_custom_call.1} parent=59 // pred_check_branch
          %975 = sbr.rel (%p973) target = $region64
        $region63: #{tpu_custom_call.1} parent=59 // pred_region
          %s977 = ssub.s32 128, 128
          %978 = vsyncadd %s969, %s977
          %s979 = smul.addr %s24, 128
          %s980 = scalar_lea.hbm %s10, %s979
          %s982 = sshll.u32 %s972, 4
          %s983 = int_to_ptr.vmem [resolvable:$true] %s982
          %985 = dma.vmem_to_hbm [thread:$0]  %s983, 128, %s980, %s969
        $region64: #{tpu_custom_call.1} parent=59 // pred_fallthru
          _
      $region60: #{tpu_custom_call.1} parent=5 // pred_fallthru
        _
      %p986 = scmp.le.s32.totalorder 2, %s19
      // Predicated region
      $region65: #{tpu_custom_call.1} parent=5 // pred_check
        %p987 = pneg %p986
      $region66: #{tpu_custom_call.1} parent=5 // pred_check_branch
        %989 = sbr.rel (%p987) target = $region68
      $region67: #{tpu_custom_call.1} parent=5 // pred_region
        %s990 = ssub.s32 %s19, 2
        // Predicated region
        $region69: #{tpu_custom_call.1} parent=67 // pred_check
          %p991 = pneg %p263
        $region70: #{tpu_custom_call.1} parent=67 // pred_check_branch
          %993 = sbr.rel (%p991) target = $region72
        $region71: #{tpu_custom_call.1} parent=67 // pred_region
          %s994 = sand.u32 %s248, 1
          %s995 = scalar_lea.sflag [#allocation3], %s994
          %s996 = sand.u32 %s248, 1
          %s997 = smul.addr %s996, 8
          %s998 = scalar_lea.vmem [#allocation2], %s997
          %999 = dma.done %s995, 128
        $region72: #{tpu_custom_call.1} parent=67 // pred_fallthru
          _
      $region68: #{tpu_custom_call.1} parent=5 // pred_fallthru
        _
    $region6: #{tpu_custom_call.1} parent=1 // loop_footer
      %s23 = sadd.s32 1, %s19
    $region7: #{tpu_custom_call.1} parent=1 // loop_footer_branch
      %18 = sbr.rel target = $region3
    $region8: #{tpu_custom_call.1} parent=1 // loop_exit
      _
    %1000 = vsyncpa [#allocation3], 1
    %s1001 = scalar_lea.sflag [#allocation3], 1
    %1002 = vsyncpa %s1001, 1

</llo_original>
